<compile_context>
chip_gen: v7x
topology: tpu7x:2x2x1
jax: 0.10.0
libtpu: 0.0.40
codegen_flags: <defaults>
</compile_context>

<pallas_src>
import functools

import jax
import jax.numpy as jnp
from jax.experimental import pallas as pl
from jax.experimental.pallas import tpu as pltpu


def _round_up(x: int, m: int) -> int:
    return ((x + m - 1) // m) * m


def actor_kernel(x_ref, w1_ref, b1_ref, w2_ref, b2_ref, wh_ref, bh_ref, out_ref,
                 *, action_dim: int):
    # One batch tile per grid step; all weights are VMEM-resident across the batch grid.
    x = x_ref[...]                                        # f32 (tile_b, s_pad)

    # fc1 + ReLU  (bf16 operands, f32 accumulate, f32 bias/activation)
    h1 = jnp.dot(x.astype(jnp.bfloat16), w1_ref[...],
                 preferred_element_type=jnp.float32) + b1_ref[...]
    h1 = jnp.maximum(h1, 0.0)

    # fc2 + ReLU
    h2 = jnp.dot(h1.astype(jnp.bfloat16), w2_ref[...],
                 preferred_element_type=jnp.float32) + b2_ref[...]
    h2 = jnp.maximum(h2, 0.0)

    # Fused heads: ONE matmul into a single 128-lane-padded block.
    #   lanes [0, A)   -> mean  = tanh(.)
    #   lanes [A, 2A)  -> std   = exp(.)
    #   lanes >= 2A    -> padding (exp(0)=1), sliced away in the wrapper.
    heads = jnp.dot(h2.astype(jnp.bfloat16), wh_ref[...],
                    preferred_element_type=jnp.float32) + bh_ref[...]
    lane = jax.lax.broadcasted_iota(jnp.int32, heads.shape, 1)
    out_ref[...] = jnp.where(lane < action_dim, jnp.tanh(heads), jnp.exp(heads))


def pack_params(params, state_dim: int, action_dim: int, lane_pad: int = 128):
    """One-time re-layout: pad fc1 K-dim to 8, fuse both heads into one 128-lane block,
    and store matmul weights in bf16 (biases stay f32)."""
    hidden = params["w1"].shape[1]
    s_pad = _round_up(state_dim, 8)
    p = _round_up(2 * action_dim, lane_pad)               # single fused head width (128)

    w1p = jnp.zeros((s_pad, hidden), jnp.float32).at[:state_dim, :].set(params["w1"])

    wh = jnp.zeros((hidden, p), jnp.float32)
    wh = wh.at[:, :action_dim].set(params["w3"])
    wh = wh.at[:, action_dim:2 * action_dim].set(params["wl"])
    bh = jnp.zeros((1, p), jnp.float32)
    bh = bh.at[:, :action_dim].set(params["b3"])
    bh = bh.at[:, action_dim:2 * action_dim].set(params["bl"])

    return {
        "w1": w1p.astype(jnp.bfloat16), "b1": params["b1"].astype(jnp.float32),
        "w2": params["w2"].astype(jnp.bfloat16), "b2": params["b2"].astype(jnp.float32),
        "wh": wh.astype(jnp.bfloat16), "bh": bh,
        "state_dim": state_dim, "action_dim": action_dim,
    }


@functools.partial(jax.jit, static_argnames=("tile_b", "action_dim"))
def _actor_forward_padded(x_pad, w1, b1, w2, b2, wh, bh, *, tile_b: int, action_dim: int):
    b_pad, s_pad = x_pad.shape
    hidden = w1.shape[1]
    p = wh.shape[1]
    grid = (b_pad // tile_b,)

    resident = lambda i: (0, 0)            # weights: same block every step -> stay in VMEM
    in_specs = [
        pl.BlockSpec((tile_b, s_pad), lambda i: (i, 0)),   # x tile
        pl.BlockSpec((s_pad, hidden), resident),           # w1 (bf16)
        pl.BlockSpec((1, hidden), resident),               # b1 (f32)
        pl.BlockSpec((hidden, hidden), resident),          # w2 (bf16)
        pl.BlockSpec((1, hidden), resident),               # b2 (f32)
        pl.BlockSpec((hidden, p), resident),               # fused head weight (bf16)
        pl.BlockSpec((1, p), resident),                    # fused head bias (f32)
    ]
    out_specs = pl.BlockSpec((tile_b, p), lambda i: (i, 0))

    return pl.pallas_call(
        functools.partial(actor_kernel, action_dim=action_dim),
        out_shape=jax.ShapeDtypeStruct((b_pad, p), jnp.float32),
        grid=grid,
        in_specs=in_specs,
        out_specs=out_specs,
        compiler_params=pltpu.CompilerParams(
            dimension_semantics=("parallel",),   # lets v7x shard batch tiles over 2 TCs
        ),
    )(x_pad, w1, b1, w2, b2, wh, bh)


def actor_forward(x, packed, *, max_tile_b: int = 512):
    """x: (B, state_dim). packed: output of pack_params. Returns (mean, std), each (B, A)."""
    b, s_in = x.shape
    s_pad = packed["w1"].shape[0]
    action_dim = packed["action_dim"]

    # Tile selection: up to max_tile_b rows, but at least 2 grid steps whenever the batch
    # allows it (so v7x's two TensorCores both get work); always 8-aligned.
    b8 = _round_up(max(b, 8), 8)
    if b8 <= 8:
        tb = 8
    else:
        tb = min(max_tile_b, _round_up((b8 + 1) // 2, 8))
    b_pad = _round_up(b, tb)

    x_pad = jnp.zeros((b_pad, s_pad), jnp.float32).at[:b, :s_in].set(
        x.astype(jnp.float32))

    out = _actor_forward_padded(
        x_pad, packed["w1"], packed["b1"], packed["w2"], packed["b2"],
        packed["wh"], packed["bh"], tile_b=tb, action_dim=action_dim)

    mean = out[:b, :action_dim]
    std = out[:b, action_dim:2 * action_dim]
    return mean, std


def init_params(key, state_dim, action_dim, hidden_dim):
    """Deterministic synthetic init (PyTorch-Linear-like uniform ranges), (in, out) layout."""
    ks = jax.random.split(key, 8)

    def lin(kw, kb, fan_in, fan_out):
        bound = 1.0 / jnp.sqrt(fan_in)
        w = jax.random.uniform(kw, (fan_in, fan_out), jnp.float32, -bound, bound)
        b = jax.random.uniform(kb, (1, fan_out), jnp.float32, -bound, bound)
        return w, b

    w1, b1 = lin(ks[0], ks[1], state_dim, hidden_dim)
    w2, b2 = lin(ks[2], ks[3], hidden_dim, hidden_dim)
    w3, b3 = lin(ks[4], ks[5], hidden_dim, action_dim)
    wl, bl = lin(ks[6], ks[7], hidden_dim, action_dim)
    return {"w1": w1, "b1": b1, "w2": w2, "b2": b2,
            "w3": w3, "b3": b3, "wl": wl, "bl": bl}


if __name__ == "__main__":
    # Franka Panda scene: nq = nv = 9 -> state_dim = 9 + 9 + 3 = 21, action_dim = nu = 8.
    STATE_DIM = 21
    ACTION_DIM = 8
    HIDDEN_DIM = 256   # module default
    BATCH = 8

    key = jax.random.PRNGKey(0)
    k_x, k_p = jax.random.split(key)
    x = jax.random.normal(k_x, (BATCH, STATE_DIM), dtype=jnp.float32)
    params = init_params(k_p, STATE_DIM, ACTION_DIM, HIDDEN_DIM)
    packed = pack_params(params, STATE_DIM, ACTION_DIM)

    mean, std = actor_forward(x, packed)
    jax.block_until_ready((mean, std))

    # Pure-JAX f32 reference (original, unpadded weights) — module semantics.
    h1 = jnp.maximum(x @ params["w1"] + params["b1"], 0.0)
    h2 = jnp.maximum(h1 @ params["w2"] + params["b2"], 0.0)
    mean_ref = jnp.tanh(h2 @ params["w3"] + params["b3"])
    std_ref = jnp.exp(h2 @ params["wl"] + params["bl"])

    assert mean.shape == (BATCH, ACTION_DIM) and std.shape == (BATCH, ACTION_DIM)
    # Tolerance loosened vs the pure-f32 version because matmul operands are bf16
    # (f32 accumulation); errors at these magnitudes are a few 1e-3.
    assert jnp.allclose(mean, mean_ref, atol=2e-2, rtol=2e-2)
    assert jnp.allclose(std, std_ref, atol=2e-2, rtol=2e-2)

    print("KERNEL_OK")
</pallas_src>

<mosaic_0001>
module attributes {stable_mosaic.version = 11 : i64} {
  func.func @actor_kernel(%arg0: i32, %arg1: memref<8x24xf32, #tpu.memory_space<vmem>>, %arg2: memref<24x256xbf16, #tpu.memory_space<vmem>>, %arg3: memref<1x256xf32, #tpu.memory_space<vmem>>, %arg4: memref<256x256xbf16, #tpu.memory_space<vmem>>, %arg5: memref<1x256xf32, #tpu.memory_space<vmem>>, %arg6: memref<256x128xbf16, #tpu.memory_space<vmem>>, %arg7: memref<1x128xf32, #tpu.memory_space<vmem>>, %arg8: memref<8x128xf32, #tpu.memory_space<vmem>>) attributes {dimension_semantics = [#tpu.dimension_semantics<parallel>], iteration_bounds = array<i64: 1>, scalar_prefetch = 0 : i64, scratch_operands = 0 : i64, tpu.core_type = #tpu.core_type<tc>, window_params = [{transform_indices = @transform_0, window_bounds = array<i64: 8, 24>}, {pipeline_mode = #tpu.pipeline_mode<synchronous>, transform_indices = @transform_1, window_bounds = array<i64: 24, 256>}, {pipeline_mode = #tpu.pipeline_mode<synchronous>, transform_indices = @transform_2, window_bounds = array<i64: 1, 256>}, {pipeline_mode = #tpu.pipeline_mode<synchronous>, transform_indices = @transform_3, window_bounds = array<i64: 256, 256>}, {pipeline_mode = #tpu.pipeline_mode<synchronous>, transform_indices = @transform_4, window_bounds = array<i64: 1, 256>}, {pipeline_mode = #tpu.pipeline_mode<synchronous>, transform_indices = @transform_5, window_bounds = array<i64: 256, 128>}, {pipeline_mode = #tpu.pipeline_mode<synchronous>, transform_indices = @transform_6, window_bounds = array<i64: 1, 128>}, {transform_indices = @transform_7, window_bounds = array<i64: 8, 128>}]} {
    %c0 = arith.constant 0 : index
    %c0_0 = arith.constant 0 : index
    %0 = vector.load %arg1[%c0, %c0_0] : memref<8x24xf32, #tpu.memory_space<vmem>>, vector<8x24xf32>
    %1 = arith.truncf %0 : vector<8x24xf32> to vector<8x24xbf16>
    %c0_1 = arith.constant 0 : index
    %c0_2 = arith.constant 0 : index
    %2 = vector.load %arg2[%c0_1, %c0_2] : memref<24x256xbf16, #tpu.memory_space<vmem>>, vector<24x256xbf16>
    %cst = arith.constant dense<0.000000e+00> : vector<8x256xf32>
    %3 = tpu.matmul %1, %2, %cst {dimension_numbers = #tpu.dot_dimension_numbers<[1], [0], [0], [1], [0, 0, 1, 1], [], []>} : vector<8x24xbf16>, vector<24x256xbf16>, vector<8x256xf32> -> vector<8x256xf32>
    %c0_3 = arith.constant 0 : index
    %c0_4 = arith.constant 0 : index
    %4 = vector.load %arg3[%c0_3, %c0_4] : memref<1x256xf32, #tpu.memory_space<vmem>>, vector<1x256xf32>
    %5 = vector.broadcast %4 : vector<1x256xf32> to vector<8x256xf32>
    %6 = arith.addf %3, %5 : vector<8x256xf32>
    %cst_5 = arith.constant 0.000000e+00 : f32
    %7 = vector.broadcast %cst_5 : f32 to vector<8x256xf32>
    %8 = arith.maximumf %6, %7 : vector<8x256xf32>
    %9 = arith.truncf %8 : vector<8x256xf32> to vector<8x256xbf16>
    %c0_6 = arith.constant 0 : index
    %c0_7 = arith.constant 0 : index
    %10 = vector.load %arg4[%c0_6, %c0_7] : memref<256x256xbf16, #tpu.memory_space<vmem>>, vector<256x256xbf16>
    %cst_8 = arith.constant dense<0.000000e+00> : vector<8x256xf32>
    %11 = tpu.matmul %9, %10, %cst_8 {dimension_numbers = #tpu.dot_dimension_numbers<[1], [0], [0], [1], [0, 0, 1, 1], [], []>} : vector<8x256xbf16>, vector<256x256xbf16>, vector<8x256xf32> -> vector<8x256xf32>
    %c0_9 = arith.constant 0 : index
    %c0_10 = arith.constant 0 : index
    %12 = vector.load %arg5[%c0_9, %c0_10] : memref<1x256xf32, #tpu.memory_space<vmem>>, vector<1x256xf32>
    %13 = vector.broadcast %12 : vector<1x256xf32> to vector<8x256xf32>
    %14 = arith.addf %11, %13 : vector<8x256xf32>
    %cst_11 = arith.constant 0.000000e+00 : f32
    %15 = vector.broadcast %cst_11 : f32 to vector<8x256xf32>
    %16 = arith.maximumf %14, %15 : vector<8x256xf32>
    %17 = arith.truncf %16 : vector<8x256xf32> to vector<8x256xbf16>
    %c0_12 = arith.constant 0 : index
    %c0_13 = arith.constant 0 : index
    %18 = vector.load %arg6[%c0_12, %c0_13] : memref<256x128xbf16, #tpu.memory_space<vmem>>, vector<256x128xbf16>
    %cst_14 = arith.constant dense<0.000000e+00> : vector<8x128xf32>
    %19 = tpu.matmul %17, %18, %cst_14 {dimension_numbers = #tpu.dot_dimension_numbers<[1], [0], [0], [1], [0, 0, 1, 1], [], []>} : vector<8x256xbf16>, vector<256x128xbf16>, vector<8x128xf32> -> vector<8x128xf32>
    %c0_15 = arith.constant 0 : index
    %c0_16 = arith.constant 0 : index
    %20 = vector.load %arg7[%c0_15, %c0_16] : memref<1x128xf32, #tpu.memory_space<vmem>>, vector<1x128xf32>
    %21 = vector.broadcast %20 : vector<1x128xf32> to vector<8x128xf32>
    %22 = arith.addf %19, %21 : vector<8x128xf32>
    %23 = tpu.iota {dimensions = array<i32: 1>} : vector<8x128xi32>
    %c8_i32 = arith.constant 8 : i32
    %24 = vector.broadcast %c8_i32 : i32 to vector<8x128xi32>
    %25 = arith.cmpi slt, %23, %24 : vector<8x128xi32>
    %26 = math.tanh %22 : vector<8x128xf32>
    %27 = math.exp %22 : vector<8x128xf32>
    %28 = arith.select %25, %26, %27 : vector<8x128xi1>, vector<8x128xf32>
    %c0_17 = arith.constant 0 : index
    %c0_18 = arith.constant 0 : index
    %29 = vector.load %arg8[%c0_17, %c0_18] : memref<8x128xf32, #tpu.memory_space<vmem>>, vector<8x128xf32>
    tpu.vector_store %arg8[%c0_17, %c0_18], %28 {strides = array<i32>} : memref<8x128xf32, #tpu.memory_space<vmem>>, vector<8x128xf32>,
    return
  }
  func.func @transform_0(%arg0: i32) -> (i32, i32) {
    %c0_i32 = arith.constant 0 : i32
    %c0_i32_0 = arith.constant 0 : i32
    return %arg0, %c0_i32 : i32, i32
  }
  func.func @transform_1(%arg0: i32) -> (i32, i32) {
    %c0_i32 = arith.constant 0 : i32
    %c0_i32_0 = arith.constant 0 : i32
    %c0_i32_1 = arith.constant 0 : i32
    return %c0_i32, %c0_i32_0 : i32, i32
  }
  func.func @transform_2(%arg0: i32) -> (i32, i32) {
    %c0_i32 = arith.constant 0 : i32
    %c0_i32_0 = arith.constant 0 : i32
    %c0_i32_1 = arith.constant 0 : i32
    return %c0_i32, %c0_i32_0 : i32, i32
  }
  func.func @transform_3(%arg0: i32) -> (i32, i32) {
    %c0_i32 = arith.constant 0 : i32
    %c0_i32_0 = arith.constant 0 : i32
    %c0_i32_1 = arith.constant 0 : i32
    return %c0_i32, %c0_i32_0 : i32, i32
  }
  func.func @transform_4(%arg0: i32) -> (i32, i32) {
    %c0_i32 = arith.constant 0 : i32
    %c0_i32_0 = arith.constant 0 : i32
    %c0_i32_1 = arith.constant 0 : i32
    return %c0_i32, %c0_i32_0 : i32, i32
  }
  func.func @transform_5(%arg0: i32) -> (i32, i32) {
    %c0_i32 = arith.constant 0 : i32
    %c0_i32_0 = arith.constant 0 : i32
    %c0_i32_1 = arith.constant 0 : i32
    return %c0_i32, %c0_i32_0 : i32, i32
  }
  func.func @transform_6(%arg0: i32) -> (i32, i32) {
    %c0_i32 = arith.constant 0 : i32
    %c0_i32_0 = arith.constant 0 : i32
    %c0_i32_1 = arith.constant 0 : i32
    return %c0_i32, %c0_i32_0 : i32, i32
  }
  func.func @transform_7(%arg0: i32) -> (i32, i32) {
    %c0_i32 = arith.constant 0 : i32
    %c0_i32_0 = arith.constant 0 : i32
    return %arg0, %c0_i32 : i32, i32
  }
}

</mosaic_0001>

<llo_original>
// kernel: _actor_forward_padded.1
$region0: #{_actor_forward_padded.1}
  #allocation0 [shape = 'u32[]', space=smem, size = 0x4, offset = 0x4, fixed_abs, tag = 'smem constant byte address 0x4 - core index']
  #allocation1 [shape = 'u32[144,128]{1,0:T(1,128)}', space=vmem, size = 0x12000, scoped, tag = 'internal scratch']
  %s0 = inlined_call_operand.hbm [shape: f32[8,24], index: 0, kind: input, shape index: {}]
  %s1 = inlined_call_operand.hbm [shape: bf16[24,256], index: 1, kind: input, shape index: {}]
  %s2 = inlined_call_operand.vmem [shape: f32[1,256], index: 2, kind: input, shape index: {}]
  %s3 = inlined_call_operand.hbm [shape: bf16[256,256], index: 3, kind: input, shape index: {}]
  %s4 = inlined_call_operand.vmem [shape: f32[1,256], index: 4, kind: input, shape index: {}]
  %s5 = inlined_call_operand.hbm [shape: bf16[256,128], index: 5, kind: input, shape index: {}]
  %s6 = inlined_call_operand.vmem [shape: f32[1,128], index: 6, kind: input, shape index: {}]
  %s7 = inlined_call_operand.hbm [shape: f32[8,128], index: 7, kind: output, shape index: {}]
  %s8 = sld [smem:[#allocation0]]
  $region54: #{_actor_forward_padded.1} parent=0
    _
  %s10 = ssub.s32 1, %s8
  %s11 = scalar_select 0, %s10, %s8
  $region1: #{_actor_forward_padded.1} parent=0
    #allocation2 [shape = 'u8[4096]{0}', space=vmem, size = 0x1000, scoped, tag = 'input window, operand 0, single buffered']
    #allocation3 [shape = 's32[1]{0}', space=sflag, size = 0x4, scoped, tag = 'scoped memory for _actor_forward_padded.1']
    #allocation4 [shape = 's32[1]{0}', space=sflag, size = 0x4, scoped, tag = 'scoped memory for _actor_forward_padded.1']
    #allocation5 [shape = 'u8[12288]{0}', space=vmem, size = 0x3000, scoped, tag = 'input window, operand 1, single buffered']
    #allocation6 [shape = 's32[1]{0}', space=sflag, size = 0x4, scoped, tag = 'scoped memory for _actor_forward_padded.1']
    #allocation7 [shape = 'u8[131072]{0}', space=vmem, size = 0x20000, scoped, tag = 'input window, operand 3, single buffered']
    #allocation8 [shape = 'u8[65536]{0}', space=vmem, size = 0x10000, scoped, tag = 'input window, operand 5, single buffered']
    #allocation9 [shape = 's32[1]{0}', space=sflag, size = 0x4, scoped, tag = 'scoped memory for _actor_forward_padded.1']
    #allocation10 [shape = 'u8[4096]{0}', space=vmem, size = 0x1000, scoped, tag = 'output window, operand 0, single buffered']
    %12 = vsyncpa [#allocation3], 0
    %13 = vsyncpa [#allocation6], 0
    %14 = vsyncpa [#allocation9], 0
    %15 = vsyncpa [#allocation4], 0
    // Predicated region
    $region2: #{_actor_forward_padded.1} parent=1 // pred_check
      _
    $region3: #{_actor_forward_padded.1} parent=1 // pred_check_branch
      %17 = sbr.rel (0) target = $region5
    $region4: #{_actor_forward_padded.1} parent=1 // pred_region
      %s19 = ssub.s32 128, 128
      %20 = vsyncadd [#allocation3], %s19
      %s22 = sshll.u32 [#allocation2], 4
      %s23 = int_to_ptr.vmem [resolvable:$true] %s22
      %25 = dma.hbm_to_vmem [thread:$0]  %s0, 128, %s23, [#allocation3]
    $region5: #{_actor_forward_padded.1} parent=1 // pred_fallthru
      _
    // Predicated region
    $region6: #{_actor_forward_padded.1} parent=1 // pred_check
      _
    $region7: #{_actor_forward_padded.1} parent=1 // pred_check_branch
      %27 = sbr.rel (0) target = $region9
    $region8: #{_actor_forward_padded.1} parent=1 // pred_region
      %s29 = ssub.s32 384, 384
      %30 = vsyncadd [#allocation6], %s29
      %s31 = sshll.u32 [#allocation5], 4
      %s32 = int_to_ptr.vmem [resolvable:$true] %s31
      %37 = dma.hbm_to_vmem [thread:$0]  %s1, 384, %s32, [#allocation6], 128, 128, 8
    $region9: #{_actor_forward_padded.1} parent=1 // pred_fallthru
      _
    // Predicated region
    $region10: #{_actor_forward_padded.1} parent=1 // pred_check
      _
    $region11: #{_actor_forward_padded.1} parent=1 // pred_check_branch
      %39 = sbr.rel (0) target = $region13
    $region12: #{_actor_forward_padded.1} parent=1 // pred_region
      _
    $region13: #{_actor_forward_padded.1} parent=1 // pred_fallthru
      _
    // Predicated region
    $region14: #{_actor_forward_padded.1} parent=1 // pred_check
      _
    $region15: #{_actor_forward_padded.1} parent=1 // pred_check_branch
      %41 = sbr.rel (0) target = $region17
    $region16: #{_actor_forward_padded.1} parent=1 // pred_region
      %s43 = ssub.s32 4096, 4096
      %44 = vsyncadd [#allocation6], %s43
      %s45 = sshll.u32 [#allocation7], 4
      %s46 = int_to_ptr.vmem [resolvable:$true] %s45
      %51 = dma.hbm_to_vmem [thread:$0]  %s3, 4096, %s46, [#allocation6], 128, 128, 8
    $region17: #{_actor_forward_padded.1} parent=1 // pred_fallthru
      _
    // Predicated region
    $region18: #{_actor_forward_padded.1} parent=1 // pred_check
      _
    $region19: #{_actor_forward_padded.1} parent=1 // pred_check_branch
      %53 = sbr.rel (0) target = $region21
    $region20: #{_actor_forward_padded.1} parent=1 // pred_region
      _
    $region21: #{_actor_forward_padded.1} parent=1 // pred_fallthru
      _
    // Predicated region
    $region22: #{_actor_forward_padded.1} parent=1 // pred_check
      _
    $region23: #{_actor_forward_padded.1} parent=1 // pred_check_branch
      %55 = sbr.rel (0) target = $region25
    $region24: #{_actor_forward_padded.1} parent=1 // pred_region
      %s57 = ssub.s32 2048, 2048
      %58 = vsyncadd [#allocation9], %s57
      %s59 = sshll.u32 [#allocation8], 4
      %s60 = int_to_ptr.vmem [resolvable:$true] %s59
      %65 = dma.hbm_to_vmem [thread:$0]  %s5, 2048, %s60, [#allocation9], 64, 64, 4
    $region25: #{_actor_forward_padded.1} parent=1 // pred_fallthru
      _
    // Predicated region
    $region26: #{_actor_forward_padded.1} parent=1 // pred_check
      _
    $region27: #{_actor_forward_padded.1} parent=1 // pred_check_branch
      %67 = sbr.rel (0) target = $region29
    $region28: #{_actor_forward_padded.1} parent=1 // pred_region
      _
    $region29: #{_actor_forward_padded.1} parent=1 // pred_fallthru
      _
    // Predicated region
    $region30: #{_actor_forward_padded.1} parent=1 // pred_check
      _
    $region31: #{_actor_forward_padded.1} parent=1 // pred_check_branch
      %69 = sbr.rel (0) target = $region33
    $region32: #{_actor_forward_padded.1} parent=1 // pred_region
      %70 = dma.done [#allocation3], 128
    $region33: #{_actor_forward_padded.1} parent=1 // pred_fallthru
      _
    // Predicated region
    $region34: #{_actor_forward_padded.1} parent=1 // pred_check
      _
    $region35: #{_actor_forward_padded.1} parent=1 // pred_check_branch
      %72 = sbr.rel (0) target = $region37
    $region36: #{_actor_forward_padded.1} parent=1 // pred_region
      %73 = dma.done [#allocation6], 384
    $region37: #{_actor_forward_padded.1} parent=1 // pred_fallthru
      _
    // Predicated region
    $region38: #{_actor_forward_padded.1} parent=1 // pred_check
      _
    $region39: #{_actor_forward_padded.1} parent=1 // pred_check_branch
      %75 = sbr.rel (0) target = $region41
    $region40: #{_actor_forward_padded.1} parent=1 // pred_region
      %76 = dma.done [#allocation6], 4096
    $region41: #{_actor_forward_padded.1} parent=1 // pred_fallthru
      _
    // Predicated region
    $region42: #{_actor_forward_padded.1} parent=1 // pred_check
      _
    $region43: #{_actor_forward_padded.1} parent=1 // pred_check_branch
      %78 = sbr.rel (0) target = $region45
    $region44: #{_actor_forward_padded.1} parent=1 // pred_region
      %79 = dma.done [#allocation9], 2048
    $region45: #{_actor_forward_padded.1} parent=1 // pred_fallthru
      _
    %v81 = vld [vmem:[#allocation2] sm:$0xff]
    %v82 = vpack.c.bf16 %v81, %v81
    %v83 = vld [vmem:[#allocation5] sm:$0xff]
    %v84 = vld [vmem:[#allocation5 + $0x8] sm:$0xff]
    %v85 = vld [vmem:[#allocation5 + $0x10] sm:$0xff]
    %v86 = vld [vmem:[%s2] sm:$0x3]
    %v88 = vlaneseq
    %v89 = vshrl.u32 %v88, 7
    %v90 = vsub.s32 0, %v89
    %v91 = vrot.slane %v86, %v90
    %v92 = vlaneseq
    %v93 = vshrl.u32 %v92, 7
    %v94 = vsub.s32 1, %v93
    %v95 = vrot.slane %v86, %v94
    %v101 = vunpack.c.l.b16 %v83
    %v102 = vunpack.c.h.b16 %v83
    %v103 = vunpack.c.l.b16 %v84
    %v104 = vunpack.c.h.b16 %v84
    %v105 = vunpack.c.l.b16 %v85
    %v106 = vunpack.c.h.b16 %v85
    %v107 = vpack.c.b16 %v103, %v101
    %v108 = vpack.c.b16 %v104, %v102
    %v109 = vpack.c.b16 %v105, %v105
    %v110 = vpack.c.b16 %v106, %v106
    %vm113 = vcmask 195584
    %v115 = vsel %vm113, %v82, 0
    %vm117 = vcmask 1043456
    %v119 = vsel %vm117, %v109, 0
    %v122 = vsel %vm117, %v110, 0
    %124 = vmatprep.subr.bf16.mxu0 %v108
    %125 = vmatpush1.bf16.msra.mxu0 %v107
    %126 = vmatprep.subr.bf16.mxu0 %v122
    %127 = vmatpush1.bf16.msra.mxu0 %v119
    %128 = vmatprep.subr.bf16.mxu0 0
    %129 = vmatpush1.bf16.msra.mxu0 0
    %130 = vmatprep.subr.bf16.mxu0 0
    %131 = vmatpush1.bf16.msra.mxu0 0
    %132 = vmatprep.subr.bf16.mxu0 0
    %133 = vmatpush1.bf16.msra.mxu0 0
    %134 = vmatprep.subr.bf16.mxu0 0
    %135 = vmatpush1.bf16.msra.mxu0 0
    %136 = vmatprep.subr.bf16.mxu0 0
    %137 = vmatpush1.bf16.msra.mxu0 0
    %138 = vmatprep.subr.bf16.mxu0 0
    %139 = vmatpush1.bf16.msra.mxu0 0
    %140 = vmatprep.subr.bf16.mxu0 0
    %141 = vmatpush1.bf16.msra.mxu0 0
    %142 = vmatprep.subr.bf16.mxu0 0
    %143 = vmatpush1.bf16.msra.mxu0 0
    %144 = vmatprep.subr.bf16.mxu0 0
    %145 = vmatpush1.bf16.msra.mxu0 0
    %146 = vmatprep.subr.bf16.mxu0 0
    %147 = vmatpush1.bf16.msra.mxu0 0
    %148 = vmatprep.subr.bf16.mxu0 0
    %149 = vmatpush1.bf16.msra.mxu0 0
    %150 = vmatprep.subr.bf16.mxu0 0
    %151 = vmatpush1.bf16.msra.mxu0 0
    %152 = vmatprep.subr.bf16.mxu0 0
    %153 = vmatpush1.bf16.msra.mxu0 0
    %154 = vmatprep.subr.bf16.mxu0 0
    %155 = vmatpush1.bf16.msra.mxu0 0
    %156 = vmatprep.mubr.bf16.mxu0 0
    %157 = vmatmul.mubr.bf16.gmra.mrb[0].mxu0 %v115
    %v158 = vpop.f32.mrb[0].mxu0
    %v159 = vadd.f32 %v91, %v158
    %v160 = vpop.f32.mrb[0].mxu0
    %v161 = vadd.f32 %v95, %v160
    %v162 = vpop.f32.mrb[0].mxu0
    %v163 = vpop.f32.mrb[0].mxu0
    %164 = vdwg.mxu0
    %v165 = vmax.f32 %v159, 0.0
    %v166 = vmax.f32 %v161, 0.0
    %v167 = vpack.c.bf16 %v165, %v165
    %v168 = vpack.c.bf16 %v166, %v166
    %v169 = vld [vmem:[#allocation7] sm:$0xff]
    %v170 = vld [vmem:[#allocation7 + $0x8] sm:$0xff]
    %v171 = vld [vmem:[#allocation7 + $0x10] sm:$0xff]
    %v172 = vld [vmem:[#allocation7 + $0x18] sm:$0xff]
    %v173 = vld [vmem:[#allocation7 + $0x20] sm:$0xff]
    %v174 = vld [vmem:[#allocation7 + $0x28] sm:$0xff]
    %v175 = vld [vmem:[#allocation7 + $0x30] sm:$0xff]
    %v176 = vld [vmem:[#allocation7 + $0x38] sm:$0xff]
    %v177 = vld [vmem:[#allocation7 + $0x40] sm:$0xff]
    %v178 = vld [vmem:[#allocation7 + $0x48] sm:$0xff]
    %v179 = vld [vmem:[#allocation7 + $0x50] sm:$0xff]
    %v180 = vld [vmem:[#allocation7 + $0x58] sm:$0xff]
    %v181 = vld [vmem:[#allocation7 + $0x60] sm:$0xff]
    %v182 = vld [vmem:[#allocation7 + $0x68] sm:$0xff]
    %v183 = vld [vmem:[#allocation7 + $0x70] sm:$0xff]
    %v184 = vld [vmem:[#allocation7 + $0x78] sm:$0xff]
    %v185 = vld [vmem:[#allocation7 + $0x80] sm:$0xff]
    %v186 = vld [vmem:[#allocation7 + $0x88] sm:$0xff]
    %v187 = vld [vmem:[#allocation7 + $0x90] sm:$0xff]
    %v188 = vld [vmem:[#allocation7 + $0x98] sm:$0xff]
    %v189 = vld [vmem:[#allocation7 + $0xa0] sm:$0xff]
    %v190 = vld [vmem:[#allocation7 + $0xa8] sm:$0xff]
    %v191 = vld [vmem:[#allocation7 + $0xb0] sm:$0xff]
    %v192 = vld [vmem:[#allocation7 + $0xb8] sm:$0xff]
    %v193 = vld [vmem:[#allocation7 + $0xc0] sm:$0xff]
    %v194 = vld [vmem:[#allocation7 + $0xc8] sm:$0xff]
    %v195 = vld [vmem:[#allocation7 + $0xd0] sm:$0xff]
    %v196 = vld [vmem:[#allocation7 + $0xd8] sm:$0xff]
    %v197 = vld [vmem:[#allocation7 + $0xe0] sm:$0xff]
    %v198 = vld [vmem:[#allocation7 + $0xe8] sm:$0xff]
    %v199 = vld [vmem:[#allocation7 + $0xf0] sm:$0xff]
    %v200 = vld [vmem:[#allocation7 + $0xf8] sm:$0xff]
    %v201 = vld [vmem:[%s4] sm:$0x3]
    %v203 = vlaneseq
    %v204 = vshrl.u32 %v203, 7
    %v205 = vsub.s32 0, %v204
    %v206 = vrot.slane %v201, %v205
    %v207 = vlaneseq
    %v208 = vshrl.u32 %v207, 7
    %v209 = vsub.s32 1, %v208
    %v210 = vrot.slane %v201, %v209
    %v245 = vunpack.c.l.b16 %v169
    %v246 = vunpack.c.h.b16 %v169
    %v247 = vunpack.c.l.b16 %v170
    %v248 = vunpack.c.h.b16 %v170
    %v249 = vunpack.c.l.b16 %v171
    %v250 = vunpack.c.h.b16 %v171
    %v251 = vunpack.c.l.b16 %v172
    %v252 = vunpack.c.h.b16 %v172
    %v253 = vunpack.c.l.b16 %v173
    %v254 = vunpack.c.h.b16 %v173
    %v255 = vunpack.c.l.b16 %v174
    %v256 = vunpack.c.h.b16 %v174
    %v257 = vunpack.c.l.b16 %v175
    %v258 = vunpack.c.h.b16 %v175
    %v259 = vunpack.c.l.b16 %v176
    %v260 = vunpack.c.h.b16 %v176
    %v261 = vunpack.c.l.b16 %v177
    %v262 = vunpack.c.h.b16 %v177
    %v263 = vunpack.c.l.b16 %v178
    %v264 = vunpack.c.h.b16 %v178
    %v265 = vunpack.c.l.b16 %v179
    %v266 = vunpack.c.h.b16 %v179
    %v267 = vunpack.c.l.b16 %v180
    %v268 = vunpack.c.h.b16 %v180
    %v269 = vunpack.c.l.b16 %v181
    %v270 = vunpack.c.h.b16 %v181
    %v271 = vunpack.c.l.b16 %v182
    %v272 = vunpack.c.h.b16 %v182
    %v273 = vunpack.c.l.b16 %v183
    %v274 = vunpack.c.h.b16 %v183
    %v275 = vunpack.c.l.b16 %v184
    %v276 = vunpack.c.h.b16 %v184
    %v277 = vunpack.c.l.b16 %v185
    %v278 = vunpack.c.h.b16 %v185
    %v279 = vunpack.c.l.b16 %v186
    %v280 = vunpack.c.h.b16 %v186
    %v281 = vunpack.c.l.b16 %v187
    %v282 = vunpack.c.h.b16 %v187
    %v283 = vunpack.c.l.b16 %v188
    %v284 = vunpack.c.h.b16 %v188
    %v285 = vunpack.c.l.b16 %v189
    %v286 = vunpack.c.h.b16 %v189
    %v287 = vunpack.c.l.b16 %v190
    %v288 = vunpack.c.h.b16 %v190
    %v289 = vunpack.c.l.b16 %v191
    %v290 = vunpack.c.h.b16 %v191
    %v291 = vunpack.c.l.b16 %v192
    %v292 = vunpack.c.h.b16 %v192
    %v293 = vunpack.c.l.b16 %v193
    %v294 = vunpack.c.h.b16 %v193
    %v295 = vunpack.c.l.b16 %v194
    %v296 = vunpack.c.h.b16 %v194
    %v297 = vunpack.c.l.b16 %v195
    %v298 = vunpack.c.h.b16 %v195
    %v299 = vunpack.c.l.b16 %v196
    %v300 = vunpack.c.h.b16 %v196
    %v301 = vunpack.c.l.b16 %v197
    %v302 = vunpack.c.h.b16 %v197
    %v303 = vunpack.c.l.b16 %v198
    %v304 = vunpack.c.h.b16 %v198
    %v305 = vunpack.c.l.b16 %v199
    %v306 = vunpack.c.h.b16 %v199
    %v307 = vunpack.c.l.b16 %v200
    %v308 = vunpack.c.h.b16 %v200
    %v309 = vpack.c.b16 %v247, %v245
    %v310 = vpack.c.b16 %v248, %v246
    %v311 = vpack.c.b16 %v251, %v249
    %v312 = vpack.c.b16 %v252, %v250
    %v313 = vpack.c.b16 %v255, %v253
    %v314 = vpack.c.b16 %v256, %v254
    %v315 = vpack.c.b16 %v259, %v257
    %v316 = vpack.c.b16 %v260, %v258
    %v317 = vpack.c.b16 %v263, %v261
    %v318 = vpack.c.b16 %v264, %v262
    %v319 = vpack.c.b16 %v267, %v265
    %v320 = vpack.c.b16 %v268, %v266
    %v321 = vpack.c.b16 %v271, %v269
    %v322 = vpack.c.b16 %v272, %v270
    %v323 = vpack.c.b16 %v275, %v273
    %v324 = vpack.c.b16 %v276, %v274
    %v325 = vpack.c.b16 %v279, %v277
    %v326 = vpack.c.b16 %v280, %v278
    %v327 = vpack.c.b16 %v283, %v281
    %v328 = vpack.c.b16 %v284, %v282
    %v329 = vpack.c.b16 %v287, %v285
    %v330 = vpack.c.b16 %v288, %v286
    %v331 = vpack.c.b16 %v291, %v289
    %v332 = vpack.c.b16 %v292, %v290
    %v333 = vpack.c.b16 %v295, %v293
    %v334 = vpack.c.b16 %v296, %v294
    %v335 = vpack.c.b16 %v299, %v297
    %v336 = vpack.c.b16 %v300, %v298
    %v337 = vpack.c.b16 %v303, %v301
    %v338 = vpack.c.b16 %v304, %v302
    %v339 = vpack.c.b16 %v307, %v305
    %v340 = vpack.c.b16 %v308, %v306
    %373 = vmatprep.subr.bf16.mxu0 %v310
    %374 = vmatpush1.bf16.msra.mxu0 %v309
    %375 = vmatprep.subr.bf16.mxu0 %v312
    %376 = vmatpush1.bf16.msra.mxu0 %v311
    %377 = vmatprep.subr.bf16.mxu0 %v314
    %378 = vmatpush1.bf16.msra.mxu0 %v313
    %379 = vmatprep.subr.bf16.mxu0 %v316
    %380 = vmatpush1.bf16.msra.mxu0 %v315
    %381 = vmatprep.subr.bf16.mxu0 %v318
    %382 = vmatpush1.bf16.msra.mxu0 %v317
    %383 = vmatprep.subr.bf16.mxu0 %v320
    %384 = vmatpush1.bf16.msra.mxu0 %v319
    %385 = vmatprep.subr.bf16.mxu0 %v322
    %386 = vmatpush1.bf16.msra.mxu0 %v321
    %387 = vmatprep.subr.bf16.mxu0 %v324
    %388 = vmatpush1.bf16.msra.mxu0 %v323
    %389 = vmatprep.subr.bf16.mxu0 %v326
    %390 = vmatpush1.bf16.msra.mxu0 %v325
    %391 = vmatprep.subr.bf16.mxu0 %v328
    %392 = vmatpush1.bf16.msra.mxu0 %v327
    %393 = vmatprep.subr.bf16.mxu0 %v330
    %394 = vmatpush1.bf16.msra.mxu0 %v329
    %395 = vmatprep.subr.bf16.mxu0 %v332
    %396 = vmatpush1.bf16.msra.mxu0 %v331
    %397 = vmatprep.subr.bf16.mxu0 %v334
    %398 = vmatpush1.bf16.msra.mxu0 %v333
    %399 = vmatprep.subr.bf16.mxu0 %v336
    %400 = vmatpush1.bf16.msra.mxu0 %v335
    %401 = vmatprep.subr.bf16.mxu0 %v338
    %402 = vmatpush1.bf16.msra.mxu0 %v337
    %403 = vmatprep.subr.bf16.mxu0 %v340
    %404 = vmatpush1.bf16.msra.mxu0 %v339
    %405 = vmatprep.mubr.bf16.mxu0 %v168
    %406 = vmatmul.mubr.bf16.gmra.mrb[0].mxu0 %v167
    %v407 = vpop.f32.mrb[0].mxu0
    %v408 = vadd.f32 %v206, %v407
    %v409 = vpop.f32.mrb[0].mxu0
    %v410 = vadd.f32 %v210, %v409
    %v411 = vpop.f32.mrb[0].mxu0
    %v412 = vpop.f32.mrb[0].mxu0
    %413 = vdwg.mxu0
    %v414 = vmax.f32 %v408, 0.0
    %v415 = vmax.f32 %v410, 0.0
    %v416 = vpack.c.bf16 %v414, %v414
    %v417 = vpack.c.bf16 %v415, %v415
    %v418 = vld [vmem:[#allocation8] sm:$0xf]
    %v419 = vld [vmem:[#allocation8 + $0x4] sm:$0xf]
    %v420 = vld [vmem:[#allocation8 + $0x8] sm:$0xf]
    %v421 = vld [vmem:[#allocation8 + $0xc] sm:$0xf]
    %v422 = vld [vmem:[#allocation8 + $0x10] sm:$0xf]
    %v423 = vld [vmem:[#allocation8 + $0x14] sm:$0xf]
    %v424 = vld [vmem:[#allocation8 + $0x18] sm:$0xf]
    %v425 = vld [vmem:[#allocation8 + $0x1c] sm:$0xf]
    %v426 = vld [vmem:[#allocation8 + $0x20] sm:$0xf]
    %v427 = vld [vmem:[#allocation8 + $0x24] sm:$0xf]
    %v428 = vld [vmem:[#allocation8 + $0x28] sm:$0xf]
    %v429 = vld [vmem:[#allocation8 + $0x2c] sm:$0xf]
    %v430 = vld [vmem:[#allocation8 + $0x30] sm:$0xf]
    %v431 = vld [vmem:[#allocation8 + $0x34] sm:$0xf]
    %v432 = vld [vmem:[#allocation8 + $0x38] sm:$0xf]
    %v433 = vld [vmem:[#allocation8 + $0x3c] sm:$0xf]
    %v434 = vld [vmem:[#allocation8 + $0x40] sm:$0xf]
    %v435 = vld [vmem:[#allocation8 + $0x44] sm:$0xf]
    %v436 = vld [vmem:[#allocation8 + $0x48] sm:$0xf]
    %v437 = vld [vmem:[#allocation8 + $0x4c] sm:$0xf]
    %v438 = vld [vmem:[#allocation8 + $0x50] sm:$0xf]
    %v439 = vld [vmem:[#allocation8 + $0x54] sm:$0xf]
    %v440 = vld [vmem:[#allocation8 + $0x58] sm:$0xf]
    %v441 = vld [vmem:[#allocation8 + $0x5c] sm:$0xf]
    %v442 = vld [vmem:[#allocation8 + $0x60] sm:$0xf]
    %v443 = vld [vmem:[#allocation8 + $0x64] sm:$0xf]
    %v444 = vld [vmem:[#allocation8 + $0x68] sm:$0xf]
    %v445 = vld [vmem:[#allocation8 + $0x6c] sm:$0xf]
    %v446 = vld [vmem:[#allocation8 + $0x70] sm:$0xf]
    %v447 = vld [vmem:[#allocation8 + $0x74] sm:$0xf]
    %v448 = vld [vmem:[#allocation8 + $0x78] sm:$0xf]
    %v449 = vld [vmem:[#allocation8 + $0x7c] sm:$0xf]
    %v450 = vld [vmem:[%s6] sm:$0x1]
    %v452 = vlaneseq
    %v453 = vshrl.u32 %v452, 7
    %v454 = vsub.s32 0, %v453
    %v455 = vrot.slane %v450, %v454
    %v489 = vunpack.c.l.b16 %v418
    %v490 = vunpack.c.l.b16 %v419
    %v491 = vunpack.c.l.b16 %v420
    %v492 = vunpack.c.l.b16 %v421
    %v493 = vunpack.c.l.b16 %v422
    %v494 = vunpack.c.l.b16 %v423
    %v495 = vunpack.c.l.b16 %v424
    %v496 = vunpack.c.l.b16 %v425
    %v497 = vunpack.c.l.b16 %v426
    %v498 = vunpack.c.l.b16 %v427
    %v499 = vunpack.c.l.b16 %v428
    %v500 = vunpack.c.l.b16 %v429
    %v501 = vunpack.c.l.b16 %v430
    %v502 = vunpack.c.l.b16 %v431
    %v503 = vunpack.c.l.b16 %v432
    %v504 = vunpack.c.l.b16 %v433
    %v505 = vunpack.c.l.b16 %v434
    %v506 = vunpack.c.l.b16 %v435
    %v507 = vunpack.c.l.b16 %v436
    %v508 = vunpack.c.l.b16 %v437
    %v509 = vunpack.c.l.b16 %v438
    %v510 = vunpack.c.l.b16 %v439
    %v511 = vunpack.c.l.b16 %v440
    %v512 = vunpack.c.l.b16 %v441
    %v513 = vunpack.c.l.b16 %v442
    %v514 = vunpack.c.l.b16 %v443
    %v515 = vunpack.c.l.b16 %v444
    %v516 = vunpack.c.l.b16 %v445
    %v517 = vunpack.c.l.b16 %v446
    %v518 = vunpack.c.l.b16 %v447
    %v519 = vunpack.c.l.b16 %v448
    %v520 = vunpack.c.l.b16 %v449
    %v521 = vpack.c.b16 %v490, %v489
    %v522 = vpack.c.b16 %v492, %v491
    %v523 = vpack.c.b16 %v494, %v493
    %v524 = vpack.c.b16 %v496, %v495
    %v525 = vpack.c.b16 %v498, %v497
    %v526 = vpack.c.b16 %v500, %v499
    %v527 = vpack.c.b16 %v502, %v501
    %v528 = vpack.c.b16 %v504, %v503
    %v529 = vpack.c.b16 %v506, %v505
    %v530 = vpack.c.b16 %v508, %v507
    %v531 = vpack.c.b16 %v510, %v509
    %v532 = vpack.c.b16 %v512, %v511
    %v533 = vpack.c.b16 %v514, %v513
    %v534 = vpack.c.b16 %v516, %v515
    %v535 = vpack.c.b16 %v518, %v517
    %v536 = vpack.c.b16 %v520, %v519
    %553 = vmatprep.subr.bf16.mxu0 0
    %554 = vmatpush1.bf16.msra.mxu0 %v521
    %555 = vmatprep.subr.bf16.mxu0 0
    %556 = vmatpush1.bf16.msra.mxu0 %v522
    %557 = vmatprep.subr.bf16.mxu0 0
    %558 = vmatpush1.bf16.msra.mxu0 %v523
    %559 = vmatprep.subr.bf16.mxu0 0
    %560 = vmatpush1.bf16.msra.mxu0 %v524
    %561 = vmatprep.subr.bf16.mxu0 0
    %562 = vmatpush1.bf16.msra.mxu0 %v525
    %563 = vmatprep.subr.bf16.mxu0 0
    %564 = vmatpush1.bf16.msra.mxu0 %v526
    %565 = vmatprep.subr.bf16.mxu0 0
    %566 = vmatpush1.bf16.msra.mxu0 %v527
    %567 = vmatprep.subr.bf16.mxu0 0
    %568 = vmatpush1.bf16.msra.mxu0 %v528
    %569 = vmatprep.subr.bf16.mxu0 0
    %570 = vmatpush1.bf16.msra.mxu0 %v529
    %571 = vmatprep.subr.bf16.mxu0 0
    %572 = vmatpush1.bf16.msra.mxu0 %v530
    %573 = vmatprep.subr.bf16.mxu0 0
    %574 = vmatpush1.bf16.msra.mxu0 %v531
    %575 = vmatprep.subr.bf16.mxu0 0
    %576 = vmatpush1.bf16.msra.mxu0 %v532
    %577 = vmatprep.subr.bf16.mxu0 0
    %578 = vmatpush1.bf16.msra.mxu0 %v533
    %579 = vmatprep.subr.bf16.mxu0 0
    %580 = vmatpush1.bf16.msra.mxu0 %v534
    %581 = vmatprep.subr.bf16.mxu0 0
    %582 = vmatpush1.bf16.msra.mxu0 %v535
    %583 = vmatprep.subr.bf16.mxu0 0
    %584 = vmatpush1.bf16.msra.mxu0 %v536
    %585 = vmatprep.mubr.bf16.mxu0 %v417
    %586 = vmatmul.mubr.bf16.gmra.mrb[0].mxu0 %v416
    %v587 = vpop.f32.mrb[0].mxu0
    %v588 = vadd.f32 %v455, %v587
    %v589 = vpop.f32.mrb[0].mxu0
    %v590 = vpop.f32.mrb[0].mxu0
    %v591 = vpop.f32.mrb[0].mxu0
    %592 = vdwg.mxu0
    %v593 = vlaneseq
    %v594 = vand.u32 %v593, 127
    %vm595 = vcmp.lt.s32.totalorder %v594, 8
    %v596 = vtanh.pop %v588
    %v597 = vmul.f32 %v588, 1.442695
    %v598 = vpow.pop %v597
    %v599 = vsel %vm595, %v596, %v598
    %600 = vst [vmem:[#allocation10] sm:$0xff] %v599
    // Predicated region
    $region46: #{_actor_forward_padded.1} parent=1 // pred_check
      _
    $region47: #{_actor_forward_padded.1} parent=1 // pred_check_branch
      %602 = sbr.rel (0) target = $region49
    $region48: #{_actor_forward_padded.1} parent=1 // pred_region
      %s604 = ssub.s32 128, 128
      %605 = vsyncadd [#allocation4], %s604
      %s607 = sshll.u32 [#allocation10], 4
      %s608 = int_to_ptr.vmem [resolvable:$true] %s607
      %610 = dma.vmem_to_hbm [thread:$0]  %s608, 128, %s7, [#allocation4]
    $region49: #{_actor_forward_padded.1} parent=1 // pred_fallthru
      _
    // Predicated region
    $region50: #{_actor_forward_padded.1} parent=1 // pred_check
      _
    $region51: #{_actor_forward_padded.1} parent=1 // pred_check_branch
      %612 = sbr.rel (0) target = $region53
    $region52: #{_actor_forward_padded.1} parent=1 // pred_region
      %613 = dma.done [#allocation4], 128
    $region53: #{_actor_forward_padded.1} parent=1 // pred_fallthru
      _
    %614 = vsyncpa [#allocation3], 1
    %615 = vsyncpa [#allocation6], 1
    %616 = vsyncpa [#allocation9], 1
    %617 = vsyncpa [#allocation4], 1

</llo_original>
